<compile_context>
chip_gen: v6e
topology: v6e:2x2x1
jax: 0.10.0
libtpu: 0.0.40
codegen_flags: <defaults>
</compile_context>

<pallas_src>
import functools

import jax
import jax.numpy as jnp
from jax.experimental import pallas as pl
from jax.experimental.pallas import tpu as pltpu


def _choose_tiling(batch: int, num_classes: int, in_bytes: int):
    """Pick (block_b, strip_b, num_strips) from a VMEM budget.

    Working-set target ~24 MiB: 2 * block_b * C * in_bytes (double-buffered
    native logits) + lane-padded label columns + ~3 live strip-sized f32 temps.
    Safe for v7x (64 MiB physical / 32 MiB default scoped), v6e and v5e.
    """
    align = 16 if in_bytes < 4 else 8
    # Strip rows: bound the in-kernel f32 temporaries (~3 live strip arrays) to ~6 MiB.
    strip_b = ((6 << 20) // (12 * num_classes)) // align * align
    strip_b = max(align, min(256, strip_b))
    if batch <= strip_b:
        return batch, batch, 1            # one tile, one strip (block == full array)
    # Tile rows: double-buffered native logits + lane-padded tgt/ori under ~24 MiB.
    per_row = 2 * num_classes * in_bytes + 4 * 128 * 4
    block_b = ((24 << 20) // per_row) // strip_b * strip_b
    block_b = max(strip_b, min(block_b, 4096))
    if block_b > batch:
        block_b = max((batch // strip_b) * strip_b, strip_b)
    return block_b, strip_b, block_b // strip_b


def _po_trip_kernel(logits_ref, tgt_ref, ori_ref, out_ref, *,
                    total_b: int, block_b: int, strip_b: int, num_strips: int):
    i = pl.program_id(0)
    c = logits_ref.shape[1]
    base = i * block_b

    c1 = jnp.float32(1.0 - 1e-5)
    l2_b = c1 * c1

    # Hoisted iotas (broadcast_in_dim is not CSE'd — build them once).
    col = jax.lax.broadcasted_iota(jnp.int32, (strip_b, c), 1)   # class id per lane
    row = jax.lax.broadcasted_iota(jnp.int32, (strip_b, 1), 0)   # row id within strip

    def strip_body(r0, carry):
        acc_po, acc_ct, acc_co = carry
        # Cast fused per strip: the f32 temp is (strip_b, C), never (block_b, C).
        x = logits_ref[pl.ds(r0, strip_b), :].astype(jnp.float32)   # (rs, C)
        t = tgt_ref[pl.ds(r0, strip_b), :]                          # (rs, 1) int32
        o = ori_ref[pl.ds(r0, strip_b), :]                          # (rs, 1) int32
        valid = (base + r0 + row) < total_b                         # tail-tile mask

        # The only (rs, C) work: four lane reductions over the class axis.
        l1 = jnp.sum(jnp.abs(x), axis=1, keepdims=True)
        l2 = jnp.sum(x * x, axis=1, keepdims=True)
        lt = jnp.sum(jnp.where(col == t, x, 0.0), axis=1, keepdims=True)
        lo = jnp.sum(jnp.where(col == o, x, 0.0), axis=1, keepdims=True)

        # ---- Poincare term (closed form over the implicit one-hot) ----
        # EUP reciprocal + one Newton step (keeps full f32 accuracy for free).
        inv_l1 = pl.reciprocal(l1, approx=True)
        inv_l1 = inv_l1 * (2.0 - l1 * inv_l1)
        a_t = lt * inv_l1
        l2_a = l2 * inv_l1 * inv_l1
        sq = l2_a - 2.0 * c1 * a_t + l2_b                 # == sum((a - b)^2, 1)
        theta = 2.0 * sq / ((1.0 - l2_a) * (1.0 - l2_b))
        xx = 1.0 + theta
        po = jnp.log(xx + jnp.sqrt(xx * xx - 1.0))        # arccosh(xx), per row

        # ---- Cosine terms (closed form): |x[label]| * rsqrt(L2(x)) ----
        inv_sqrt_l2 = jax.lax.rsqrt(l2)                   # EUP
        ct = jnp.abs(lt) * inv_sqrt_l2
        co = jnp.abs(lo) * inv_sqrt_l2

        zero = jnp.float32(0.0)
        return (acc_po + jnp.where(valid, po, zero),
                acc_ct + jnp.where(valid, ct, zero),
                acc_co + jnp.where(valid, co, zero))

    init = (jnp.zeros((strip_b, 1), jnp.float32),
            jnp.zeros((strip_b, 1), jnp.float32),
            jnp.zeros((strip_b, 1), jnp.float32))

    if num_strips == 1:
        acc_po, acc_ct, acc_co = strip_body(0, init)
    else:
        def loop_body(s, carry):
            r0 = pl.multiple_of(s * strip_b, strip_b)
            return strip_body(r0, carry)
        acc_po, acc_ct, acc_co = jax.lax.fori_loop(
            0, num_strips, loop_body, init, unroll=(num_strips <= 8))

    # Collapse to scalars once per tile (not once per strip / grid step).
    sum_po = jnp.sum(acc_po)
    sum_ct = jnp.sum(acc_ct)
    sum_co = jnp.sum(acc_co)

    # Lane-dense per-tile partials: lanes 0..2 of sublane 0 hold the 3 sums.
    flat = (jax.lax.broadcasted_iota(jnp.int32, (1, 8, 128), 1) * 128
            + jax.lax.broadcasted_iota(jnp.int32, (1, 8, 128), 2))
    out_ref[...] = (jnp.where(flat == 0, sum_po, 0.0)
                    + jnp.where(flat == 1, sum_ct, 0.0)
                    + jnp.where(flat == 2, sum_co, 0.0))


def po_trip_loss(logits, ori_label, target):
    """Pallas TPU implementation of Po_trip.forward.

    logits:    (B, C) float (any float dtype; cast to f32 per strip in-kernel)
    ori_label: (B,)   int
    target:    (B,)   int
    returns scalar float32 loss
    """
    B, C = logits.shape
    in_bytes = logits.dtype.itemsize
    tb, strip_b, num_strips = _choose_tiling(B, C, in_bytes)
    num_tiles = (B + tb - 1) // tb

    tgt = target.astype(jnp.int32).reshape(B, 1)
    ori = ori_label.astype(jnp.int32).reshape(B, 1)

    kernel = functools.partial(_po_trip_kernel, total_b=B, block_b=tb,
                               strip_b=strip_b, num_strips=num_strips)

    # Explicit scoped-VMEM limit sized from the actual working set (+25% slack).
    vmem_bytes = (2 * tb * C * in_bytes      # double-buffered logits tile (native dtype)
                  + 4 * tb * 128 * 4         # tgt/ori columns, lane-padded, double-buffered
                  + 3 * strip_b * C * 4      # in-kernel f32 strip temporaries
                  + (2 << 20))               # iotas / partials / output headroom
    vmem_limit = int(min(max(vmem_bytes * 5 // 4, 16 << 20), 64 << 20))

    partials = pl.pallas_call(
        kernel,
        out_shape=jax.ShapeDtypeStruct((num_tiles, 8, 128), jnp.float32),
        grid=(num_tiles,),
        in_specs=[
            pl.BlockSpec((tb, C), lambda i: (i, 0)),   # logits tile (native dtype)
            pl.BlockSpec((tb, 1), lambda i: (i, 0)),   # target column
            pl.BlockSpec((tb, 1), lambda i: (i, 0)),   # ori_label column
        ],
        out_specs=pl.BlockSpec((1, 8, 128), lambda i: (i, 0, 0)),
        compiler_params=pltpu.CompilerParams(
            dimension_semantics=("parallel",),          # lets v7x shard tiles across TCs
            vmem_limit_bytes=vmem_limit),
    )(logits, tgt, ori)

    # Tiny epilogue in JAX: combine per-tile partials, means, clip, weighted sum.
    sums = jnp.sum(partials[:, 0, :3], axis=0)
    inv_b = jnp.float32(1.0 / B)
    loss_po = sums[0] * inv_b
    loss_cos = jnp.clip((sums[1] - sums[2]) * inv_b + 0.007, 0.0, 2.1)
    return (loss_po + 0.01 * loss_cos).astype(jnp.float32)


def _po_trip_ref(logits, ori_label, target):
    """Pure-JAX reference (mirror of the PyTorch module) for validation."""
    logits = logits.astype(jnp.float32)
    C = logits.shape[1]
    onehot_t = jax.nn.one_hot(target, C, dtype=jnp.float32)
    onehot_o = jax.nn.one_hot(ori_label, C, dtype=jnp.float32)

    def poincare(a, b):
        L2_a = jnp.sum(a * a, 1)
        L2_b = jnp.sum(b * b, 1)
        theta = 2 * jnp.sum((a - b) ** 2, 1) / ((1 - L2_a) * (1 - L2_b))
        x = 1.0 + theta
        return jnp.mean(jnp.log(x + jnp.sqrt(x ** 2 - 1)))

    def cos_dis(a, b):
        ab = jnp.abs(jnp.sum(a * b, 1))
        return jnp.mean(ab / jnp.sqrt(jnp.sum(a * a, 1) * jnp.sum(b * b, 1)))

    loss_po = poincare(
        logits / jnp.sum(jnp.abs(logits), 1, keepdims=True),
        jnp.clip(onehot_t - 1e-5, 0.0, 1.0),
    )
    loss_cos = jnp.clip(cos_dis(onehot_t, logits) - cos_dis(onehot_o, logits) + 0.007,
                        0.0, 2.1)
    return loss_po + 0.01 * loss_cos


if __name__ == "__main__":
    key = jax.random.PRNGKey(0)
    k1, k2, k3 = jax.random.split(key, 3)

    B, C = 8, 16  # small shapes: batch=8, num_classes=16
    logits = jax.random.normal(k1, (B, C), dtype=jnp.float32)
    target = jax.random.randint(k2, (B,), 0, C, dtype=jnp.int32)
    ori_label = jax.random.randint(k3, (B,), 0, C, dtype=jnp.int32)

    loss = jax.block_until_ready(po_trip_loss(logits, ori_label, target))
    ref = jax.block_until_ready(_po_trip_ref(logits, ori_label, target))

    assert jnp.allclose(loss, ref, rtol=1e-4, atol=1e-5), (loss, ref)
    print("KERNEL_OK")
</pallas_src>

<mosaic_0001>
module attributes {stable_mosaic.version = 11 : i64} {
  func.func @_po_trip_kernel(%arg0: i32, %arg1: memref<8x16xf32, #tpu.memory_space<vmem>>, %arg2: memref<8x1xi32, #tpu.memory_space<vmem>>, %arg3: memref<8x1xi32, #tpu.memory_space<vmem>>, %arg4: memref<1x8x128xf32, #tpu.memory_space<vmem>>) attributes {dimension_semantics = [#tpu.dimension_semantics<parallel>], iteration_bounds = array<i64: 1>, scalar_prefetch = 0 : i64, scratch_operands = 0 : i64, tpu.core_type = #tpu.core_type<tc>, window_params = [{transform_indices = @transform_0, window_bounds = array<i64: 8, 16>}, {transform_indices = @transform_1, window_bounds = array<i64: 8, 1>}, {transform_indices = @transform_2, window_bounds = array<i64: 8, 1>}, {transform_indices = @transform_3, window_bounds = array<i64: 1, 8, 128>}]} {
    %c8_i32 = arith.constant 8 : i32
    %0 = arith.muli %arg0, %c8_i32 : i32
    %cst = arith.constant 0.999989986 : f32
    %cst_0 = arith.constant 0.999989986 : f32
    %1 = arith.mulf %cst, %cst_0 : f32
    %2 = tpu.iota {dimensions = array<i32: 1>} : vector<8x16xi32>
    %3 = tpu.iota {dimensions = array<i32: 0>} : vector<8x1xi32>
    %cst_1 = arith.constant 0.000000e+00 : f32
    %4 = vector.broadcast %cst_1 : f32 to vector<8x1xf32>
    %cst_2 = arith.constant 0.000000e+00 : f32
    %5 = vector.broadcast %cst_2 : f32 to vector<8x1xf32>
    %cst_3 = arith.constant 0.000000e+00 : f32
    %6 = vector.broadcast %cst_3 : f32 to vector<8x1xf32>
    %c0 = arith.constant 0 : index
    %c0_4 = arith.constant 0 : index
    %7 = vector.load %arg1[%c0, %c0_4] : memref<8x16xf32, #tpu.memory_space<vmem>>, vector<8x16xf32>
    %c0_5 = arith.constant 0 : index
    %c0_6 = arith.constant 0 : index
    %8 = vector.load %arg2[%c0_5, %c0_6] : memref<8x1xi32, #tpu.memory_space<vmem>>, vector<8x1xi32>
    %c0_7 = arith.constant 0 : index
    %c0_8 = arith.constant 0 : index
    %9 = vector.load %arg3[%c0_7, %c0_8] : memref<8x1xi32, #tpu.memory_space<vmem>>, vector<8x1xi32>
    %c0_i32 = arith.constant 0 : i32
    %10 = arith.addi %0, %c0_i32 : i32
    %11 = vector.broadcast %10 : i32 to vector<8x1xi32>
    %12 = arith.addi %11, %3 : vector<8x1xi32>
    %c8_i32_9 = arith.constant 8 : i32
    %13 = vector.broadcast %c8_i32_9 : i32 to vector<8x1xi32>
    %14 = arith.cmpi slt, %12, %13 : vector<8x1xi32>
    %15 = math.absf %7 : vector<8x16xf32>
    %cst_10 = arith.constant dense<0.000000e+00> : vector<8xf32>
    %16 = vector.multi_reduction <add>, %15, %cst_10 [1] : vector<8x16xf32> to vector<8xf32>
    %17 = vector.shape_cast %16 : vector<8xf32> to vector<8x1xf32>
    %18 = arith.mulf %7, %7 : vector<8x16xf32>
    %cst_11 = arith.constant dense<0.000000e+00> : vector<8xf32>
    %19 = vector.multi_reduction <add>, %18, %cst_11 [1] : vector<8x16xf32> to vector<8xf32>
    %20 = vector.shape_cast %19 : vector<8xf32> to vector<8x1xf32>
    %21 = vector.broadcast %8 : vector<8x1xi32> to vector<8x16xi32>
    %22 = arith.cmpi eq, %2, %21 : vector<8x16xi32>
    %cst_12 = arith.constant 0.000000e+00 : f32
    %23 = vector.broadcast %cst_12 : f32 to vector<8x16xf32>
    %24 = arith.select %22, %7, %23 : vector<8x16xi1>, vector<8x16xf32>
    %cst_13 = arith.constant dense<0.000000e+00> : vector<8xf32>
    %25 = vector.multi_reduction <add>, %24, %cst_13 [1] : vector<8x16xf32> to vector<8xf32>
    %26 = vector.shape_cast %25 : vector<8xf32> to vector<8x1xf32>
    %27 = vector.broadcast %9 : vector<8x1xi32> to vector<8x16xi32>
    %28 = arith.cmpi eq, %2, %27 : vector<8x16xi32>
    %cst_14 = arith.constant 0.000000e+00 : f32
    %29 = vector.broadcast %cst_14 : f32 to vector<8x16xf32>
    %30 = arith.select %28, %7, %29 : vector<8x16xi1>, vector<8x16xf32>
    %cst_15 = arith.constant dense<0.000000e+00> : vector<8xf32>
    %31 = vector.multi_reduction <add>, %30, %cst_15 [1] : vector<8x16xf32> to vector<8xf32>
    %32 = vector.shape_cast %31 : vector<8xf32> to vector<8x1xf32>
    %33 = tpu.reciprocal %17 {approx = true} : vector<8x1xf32> -> vector<8x1xf32>
    %34 = arith.mulf %17, %33 : vector<8x1xf32>
    %cst_16 = arith.constant 2.000000e+00 : f32
    %35 = vector.broadcast %cst_16 : f32 to vector<8x1xf32>
    %36 = arith.subf %35, %34 : vector<8x1xf32>
    %37 = arith.mulf %33, %36 : vector<8x1xf32>
    %38 = arith.mulf %26, %37 : vector<8x1xf32>
    %39 = arith.mulf %20, %37 : vector<8x1xf32>
    %40 = arith.mulf %39, %37 : vector<8x1xf32>
    %cst_17 = arith.constant 2.000000e+00 : f32
    %cst_18 = arith.constant 0.999989986 : f32
    %41 = arith.mulf %cst_17, %cst_18 : f32
    %42 = vector.broadcast %41 : f32 to vector<8x1xf32>
    %43 = arith.mulf %42, %38 : vector<8x1xf32>
    %44 = arith.subf %40, %43 : vector<8x1xf32>
    %45 = vector.broadcast %1 : f32 to vector<8x1xf32>
    %46 = arith.addf %44, %45 : vector<8x1xf32>
    %cst_19 = arith.constant 2.000000e+00 : f32
    %47 = vector.broadcast %cst_19 : f32 to vector<8x1xf32>
    %48 = arith.mulf %47, %46 : vector<8x1xf32>
    %cst_20 = arith.constant 1.000000e+00 : f32
    %49 = vector.broadcast %cst_20 : f32 to vector<8x1xf32>
    %50 = arith.subf %49, %40 : vector<8x1xf32>
    %cst_21 = arith.constant 1.000000e+00 : f32
    %51 = arith.subf %cst_21, %1 : f32
    %52 = vector.broadcast %51 : f32 to vector<8x1xf32>
    %53 = arith.mulf %50, %52 : vector<8x1xf32>
    %54 = arith.divf %48, %53 : vector<8x1xf32>
    %cst_22 = arith.constant 1.000000e+00 : f32
    %55 = vector.broadcast %cst_22 : f32 to vector<8x1xf32>
    %56 = arith.addf %55, %54 : vector<8x1xf32>
    %57 = arith.mulf %56, %56 : vector<8x1xf32>
    %cst_23 = arith.constant 1.000000e+00 : f32
    %58 = vector.broadcast %cst_23 : f32 to vector<8x1xf32>
    %59 = arith.subf %57, %58 : vector<8x1xf32>
    %60 = math.sqrt %59 : vector<8x1xf32>
    %61 = arith.addf %56, %60 : vector<8x1xf32>
    %62 = math.log %61 : vector<8x1xf32>
    %63 = math.rsqrt %20 : vector<8x1xf32>
    %64 = math.absf %26 : vector<8x1xf32>
    %65 = arith.mulf %64, %63 : vector<8x1xf32>
    %66 = math.absf %32 : vector<8x1xf32>
    %67 = arith.mulf %66, %63 : vector<8x1xf32>
    %cst_24 = arith.constant 0.000000e+00 : f32
    %68 = vector.broadcast %cst_24 : f32 to vector<8x1xf32>
    %69 = arith.select %14, %62, %68 : vector<8x1xi1>, vector<8x1xf32>
    %70 = arith.addf %4, %69 : vector<8x1xf32>
    %cst_25 = arith.constant 0.000000e+00 : f32
    %71 = vector.broadcast %cst_25 : f32 to vector<8x1xf32>
    %72 = arith.select %14, %65, %71 : vector<8x1xi1>, vector<8x1xf32>
    %73 = arith.addf %5, %72 : vector<8x1xf32>
    %cst_26 = arith.constant 0.000000e+00 : f32
    %74 = vector.broadcast %cst_26 : f32 to vector<8x1xf32>
    %75 = arith.select %14, %67, %74 : vector<8x1xi1>, vector<8x1xf32>
    %76 = arith.addf %6, %75 : vector<8x1xf32>
    %77 = vector.shape_cast %70 : vector<8x1xf32> to vector<1x8x1xf32>
    %cst_27 = arith.constant dense<0.000000e+00> : vector<1xf32>
    %78 = vector.multi_reduction <add>, %77, %cst_27 [1, 2] : vector<1x8x1xf32> to vector<1xf32>
    %79 = vector.shape_cast %78 : vector<1xf32> to vector<1x1x1xf32>
    %80 = vector.extract %79[0, 0, 0] : f32 from vector<1x1x1xf32>
    %81 = vector.shape_cast %73 : vector<8x1xf32> to vector<1x8x1xf32>
    %cst_28 = arith.constant dense<0.000000e+00> : vector<1xf32>
    %82 = vector.multi_reduction <add>, %81, %cst_28 [1, 2] : vector<1x8x1xf32> to vector<1xf32>
    %83 = vector.shape_cast %82 : vector<1xf32> to vector<1x1x1xf32>
    %84 = vector.extract %83[0, 0, 0] : f32 from vector<1x1x1xf32>
    %85 = vector.shape_cast %76 : vector<8x1xf32> to vector<1x8x1xf32>
    %cst_29 = arith.constant dense<0.000000e+00> : vector<1xf32>
    %86 = vector.multi_reduction <add>, %85, %cst_29 [1, 2] : vector<1x8x1xf32> to vector<1xf32>
    %87 = vector.shape_cast %86 : vector<1xf32> to vector<1x1x1xf32>
    %88 = vector.extract %87[0, 0, 0] : f32 from vector<1x1x1xf32>
    %89 = tpu.iota {dimensions = array<i32: 1>} : vector<1x8x128xi32>
    %c128_i32 = arith.constant 128 : i32
    %90 = vector.broadcast %c128_i32 : i32 to vector<1x8x128xi32>
    %91 = arith.muli %89, %90 : vector<1x8x128xi32>
    %92 = tpu.iota {dimensions = array<i32: 2>} : vector<1x8x128xi32>
    %93 = arith.addi %91, %92 : vector<1x8x128xi32>
    %c0_i32_30 = arith.constant 0 : i32
    %94 = vector.broadcast %c0_i32_30 : i32 to vector<1x8x128xi32>
    %95 = arith.cmpi eq, %93, %94 : vector<1x8x128xi32>
    %cst_31 = arith.constant 0.000000e+00 : f32
    %96 = vector.broadcast %80 : f32 to vector<1x8x128xf32>
    %97 = vector.broadcast %cst_31 : f32 to vector<1x8x128xf32>
    %98 = arith.select %95, %96, %97 : vector<1x8x128xi1>, vector<1x8x128xf32>
    %c1_i32 = arith.constant 1 : i32
    %99 = vector.broadcast %c1_i32 : i32 to vector<1x8x128xi32>
    %100 = arith.cmpi eq, %93, %99 : vector<1x8x128xi32>
    %cst_32 = arith.constant 0.000000e+00 : f32
    %101 = vector.broadcast %84 : f32 to vector<1x8x128xf32>
    %102 = vector.broadcast %cst_32 : f32 to vector<1x8x128xf32>
    %103 = arith.select %100, %101, %102 : vector<1x8x128xi1>, vector<1x8x128xf32>
    %104 = arith.addf %98, %103 : vector<1x8x128xf32>
    %c2_i32 = arith.constant 2 : i32
    %105 = vector.broadcast %c2_i32 : i32 to vector<1x8x128xi32>
    %106 = arith.cmpi eq, %93, %105 : vector<1x8x128xi32>
    %cst_33 = arith.constant 0.000000e+00 : f32
    %107 = vector.broadcast %88 : f32 to vector<1x8x128xf32>
    %108 = vector.broadcast %cst_33 : f32 to vector<1x8x128xf32>
    %109 = arith.select %106, %107, %108 : vector<1x8x128xi1>, vector<1x8x128xf32>
    %110 = arith.addf %104, %109 : vector<1x8x128xf32>
    %c0_34 = arith.constant 0 : index
    %c0_35 = arith.constant 0 : index
    %c0_36 = arith.constant 0 : index
    %111 = vector.load %arg4[%c0_34, %c0_35, %c0_36] : memref<1x8x128xf32, #tpu.memory_space<vmem>>, vector<1x8x128xf32>
    tpu.vector_store %arg4[%c0_34, %c0_35, %c0_36], %110 {strides = array<i32>} : memref<1x8x128xf32, #tpu.memory_space<vmem>>, vector<1x8x128xf32>,
    return
  }
  func.func @transform_0(%arg0: i32) -> (i32, i32) {
    %c0_i32 = arith.constant 0 : i32
    %c0_i32_0 = arith.constant 0 : i32
    return %arg0, %c0_i32 : i32, i32
  }
  func.func @transform_1(%arg0: i32) -> (i32, i32) {
    %c0_i32 = arith.constant 0 : i32
    %c0_i32_0 = arith.constant 0 : i32
    return %arg0, %c0_i32 : i32, i32
  }
  func.func @transform_2(%arg0: i32) -> (i32, i32) {
    %c0_i32 = arith.constant 0 : i32
    %c0_i32_0 = arith.constant 0 : i32
    return %arg0, %c0_i32 : i32, i32
  }
  func.func @transform_3(%arg0: i32) -> (i32, i32, i32) {
    %c0_i32 = arith.constant 0 : i32
    %c0_i32_0 = arith.constant 0 : i32
    %c0_i32_1 = arith.constant 0 : i32
    return %arg0, %c0_i32, %c0_i32_0 : i32, i32, i32
  }
}

</mosaic_0001>

<llo_original>
// kernel: tpu_custom_call.1
$region0: #{tpu_custom_call.1}
  #allocation0 [shape = 'u32[]', space=smem, size = 0x4, offset = 0x4, fixed_abs, tag = 'smem constant byte address 0x4 - core index']
  #allocation1 [shape = 'u32[144,128]{1,0:T(1,128)}', space=vmem, size = 0x12000, scoped, tag = 'internal scratch']
  %s0 = inlined_call_operand.vmem [shape: f32[8,16], index: 0, kind: input, shape index: {}]
  %s1 = inlined_call_operand.vmem [shape: s32[8,1], index: 1, kind: input, shape index: {}]
  %s2 = inlined_call_operand.vmem [shape: s32[8,1], index: 2, kind: input, shape index: {}]
  %s3 = inlined_call_operand.hbm [shape: f32[1,8,128], index: 3, kind: output, shape index: {}]
  %s4 = sld [smem:[#allocation0]]
  $region22: #{tpu_custom_call.1} parent=0
    _
  %s6 = ssub.s32 1, %s4
  %s7 = scalar_select 0, %s6, %s4
  $region1: #{tpu_custom_call.1} parent=0
    #allocation2 [shape = 'u8[4096]{0}', space=vmem, size = 0x1000, scoped, tag = 'output window, operand 0, single buffered']
    #allocation3 [shape = 's32[1]{0}', space=sflag, size = 0x4, scoped, tag = 'scoped memory for tpu_custom_call.1']
    %8 = vsyncpa [#allocation3], 0
    // Predicated region
    $region2: #{tpu_custom_call.1} parent=1 // pred_check
      _
    $region3: #{tpu_custom_call.1} parent=1 // pred_check_branch
      %10 = sbr.rel (0) target = $region5
    $region4: #{tpu_custom_call.1} parent=1 // pred_region
      _
    $region5: #{tpu_custom_call.1} parent=1 // pred_fallthru
      _
    // Predicated region
    $region6: #{tpu_custom_call.1} parent=1 // pred_check
      _
    $region7: #{tpu_custom_call.1} parent=1 // pred_check_branch
      %12 = sbr.rel (0) target = $region9
    $region8: #{tpu_custom_call.1} parent=1 // pred_region
      _
    $region9: #{tpu_custom_call.1} parent=1 // pred_fallthru
      _
    // Predicated region
    $region10: #{tpu_custom_call.1} parent=1 // pred_check
      _
    $region11: #{tpu_custom_call.1} parent=1 // pred_check_branch
      %14 = sbr.rel (0) target = $region13
    $region12: #{tpu_custom_call.1} parent=1 // pred_region
      _
    $region13: #{tpu_custom_call.1} parent=1 // pred_fallthru
      _
    %s15 = smul.u32 0, 8
    %v16 = vlaneseq
    %v17 = vand.u32 %v16, 127
    %v18 = vlaneseq
    %v19 = vshrl.u32 %v18, 7
    %v20 = vld [vmem:[%s0] sm:$0xff]
    %v21 = vld [vmem:[%s1] sm:$0xff]
    %v22 = vld [vmem:[%s2] sm:$0xff]
    %v23 = vstv %s15
    %v24 = vadd.s32 %v23, %v19
    %vm25 = vcmp.lt.s32.totalorder %v24, 8
    %v26 = vand.u32 2147483647, %v20
    %vm27 = vcmask 130048
    %v28 = vsel %vm27, %v26, 0.0
    %29 = vadd.xlane.f32.xlu0 %v28
    %v30 = vpop.xlane.xlu0 %29
    %v31 = vmul.f32 %v20, %v20
    %v32 = vsel %vm27, %v31, 0.0
    %33 = vadd.xlane.f32.xlu0 %v32
    %v34 = vpop.xlane.xlu0 %33
    %35 = vset.pattern.permute.xlu0 0
    %36 = vperm.xlu0 %35, %v21
    %v37 = vpop.permute.xlu0 %36
    %vm38 = vcmp.eq.s32.totalorder %v17, %v37
    %v39 = vsel %vm38, %v20, 0.0
    %v40 = vsel %vm27, %v39, 0.0
    %41 = vadd.xlane.f32.xlu0 %v40
    %v42 = vpop.xlane.xlu0 %41
    %43 = vset.pattern.permute.xlu0 0
    %44 = vperm.xlu0 %43, %v22
    %v45 = vpop.permute.xlu0 %44
    %vm46 = vcmp.eq.s32.totalorder %v17, %v45
    %v47 = vsel %vm46, %v20, 0.0
    %v48 = vsel %vm27, %v47, 0.0
    %49 = vadd.xlane.f32.xlu0 %v48
    %v50 = vpop.xlane.xlu0 %49
    %v51 = vrcp.pop %v30
    %v52 = vmul.f32 %v30, %v51
    %v53 = vsub.f32 2.0, %v52
    %v54 = vmul.f32 %v51, %v53
    %v55 = vmul.f32 %v42, %v54
    %v56 = vmul.f32 %v34, %v54
    %v57 = vmul.f32 %v56, %v54
    %v58 = vmul.f32 %v55, 1.99998
    %v59 = vsub.f32 %v57, %v58
    %v60 = vadd.f32 %v59, 0.99998
    %v61 = vmul.f32 %v60, 2.0
    %v62 = vsub.f32 1.0, %v57
    %v63 = vmul.f32 %v62, 2.002716e-05
    %v64 = vrcp.pop %v63
    %v65 = vmul.f32 %v61, %v64
    %v66 = vadd.f32 %v65, 1.0
    %v67 = vmul.f32 %v66, %v66
    %v68 = vsub.f32 %v67, 1.0
    %v69 = vrsqrt.pop %v68
    %v70 = vmul.f32 %v68, %v69
    %vm71 = vcmp.eq.f32.partialorder %v68, inf
    %v72 = vsel %vm71, %v68, %v70
    %vm73 = vcmp.eq.f32.partialorder %v68, 0.0
    %v74 = vand.u32 %v68, 2147483648
    %v75 = vsel %vm73, %v74, %v72
    %v76 = vadd.f32 %v66, %v75
    %v77 = vlog2.pop %v76
    %v78 = vmul.f32 %v77, 0.6931472
    %v79 = vrsqrt.pop %v34
    %v80 = vand.u32 2147483647, %v42
    %v81 = vmul.f32 %v80, %v79
    %v82 = vand.u32 2147483647, %v50
    %v83 = vmul.f32 %v82, %v79
    %v84 = vsel %vm25, %v78, 0.0
    %v85 = vadd.f32 %v84, 0.0
    %v86 = vsel %vm25, %v81, 0.0
    %v87 = vadd.f32 %v86, 0.0
    %v88 = vsel %vm25, %v83, 0.0
    %v89 = vadd.f32 %v88, 0.0
    %vm90 = vcmask 7168
    %v91 = vsel %vm90, %v85, 0.0
    %92 = vadd.xlane.f32.xlu0 %v91
    %v93 = vpop.xlane.xlu0 %92
    %v94 = vrot.slane %v93, 4
    %v95 = vadd.f32 %v93, %v94
    %v96 = vrot.slane %v95, 2
    %v97 = vadd.f32 %v95, %v96
    %v98 = vrot.slane %v97, 1
    %v99 = vadd.f32 %v97, %v98
    %s100 = vtos %v99
    %v101 = vsel %vm90, %v87, 0.0
    %102 = vadd.xlane.f32.xlu0 %v101
    %v103 = vpop.xlane.xlu0 %102
    %v104 = vrot.slane %v103, 4
    %v105 = vadd.f32 %v103, %v104
    %v106 = vrot.slane %v105, 2
    %v107 = vadd.f32 %v105, %v106
    %v108 = vrot.slane %v107, 1
    %v109 = vadd.f32 %v107, %v108
    %s110 = vtos %v109
    %v111 = vsel %vm90, %v89, 0.0
    %112 = vadd.xlane.f32.xlu0 %v111
    %v113 = vpop.xlane.xlu0 %112
    %v114 = vrot.slane %v113, 4
    %v115 = vadd.f32 %v113, %v114
    %v116 = vrot.slane %v115, 2
    %v117 = vadd.f32 %v115, %v116
    %v118 = vrot.slane %v117, 1
    %v119 = vadd.f32 %v117, %v118
    %s120 = vtos %v119
    %v121 = vmul.u32 %v19, 128
    %v122 = vadd.s32 %v121, %v17
    %vm123 = vcmp.eq.s32.totalorder %v122, 0
    %v124 = vstv %s100
    %v125 = vsel %vm123, %v124, 0.0
    %vm126 = vcmp.eq.s32.totalorder %v122, 1
    %v127 = vstv %s110
    %v128 = vsel %vm126, %v127, 0.0
    %v129 = vadd.f32 %v125, %v128
    %vm130 = vcmp.eq.s32.totalorder %v122, 2
    %v131 = vstv %s120
    %v132 = vsel %vm130, %v131, 0.0
    %v133 = vadd.f32 %v129, %v132
    %134 = vst [vmem:[#allocation2] sm:$0xff] %v133
    // Predicated region
    $region14: #{tpu_custom_call.1} parent=1 // pred_check
      _
    $region15: #{tpu_custom_call.1} parent=1 // pred_check_branch
      %136 = sbr.rel (0) target = $region17
    $region16: #{tpu_custom_call.1} parent=1 // pred_region
      %s138 = ssub.s32 128, 128
      %139 = vsyncadd [#allocation3], %s138
      %s141 = sshll.u32 [#allocation2], 4
      %s142 = int_to_ptr.vmem [resolvable:$true] %s141
      %144 = dma.vmem_to_hbm [thread:$0]  %s142, 128, %s3, [#allocation3]
    $region17: #{tpu_custom_call.1} parent=1 // pred_fallthru
      _
    // Predicated region
    $region18: #{tpu_custom_call.1} parent=1 // pred_check
      _
    $region19: #{tpu_custom_call.1} parent=1 // pred_check_branch
      %146 = sbr.rel (0) target = $region21
    $region20: #{tpu_custom_call.1} parent=1 // pred_region
      %147 = dma.done [#allocation3], 128
    $region21: #{tpu_custom_call.1} parent=1 // pred_fallthru
      _
    %148 = vsyncpa [#allocation3], 1

</llo_original>
